<compile_context>
chip_gen: v7x
topology: tpu7x:2x2x1
jax: 0.10.0
libtpu: 0.0.40
codegen_flags: <defaults>
</compile_context>

<pallas_src>
import functools

import jax
import jax.numpy as jnp
from jax import lax
from jax.experimental import pallas as pl
from jax.experimental.pallas import tpu as pltpu

_LANE = 128
_SUBLANE = 8
_TILE_ROWS = 4096    # rows per grid step: 2 MiB / input / step at f32
_SUB_ROWS = 512      # rows per in-kernel sub-chunk (bounds live ranges)


def _log_prob_kernel(pos_ref, neg_ref, out_ref, *, mu, eps, tile_rows,
                     valid_rows_last, num_tiles):
    i = pl.program_id(0)

    # out_ref is the single (8,128) partial-sum block, resident in VMEM across
    # the whole ("arbitrary") grid axis; zero it once on the first step.
    @pl.when(i == 0)
    def _init():
        out_ref[...] = jnp.zeros_like(out_ref)

    two_mu_eps = 2.0 * mu + eps

    def chunk_losses(row0, nrows):
        pos = pos_ref[pl.ds(row0, nrows), :].astype(jnp.float32)
        neg = neg_ref[pl.ds(row0, nrows), :].astype(jnp.float32)
        num = neg + mu
        den = neg + pos + two_mu_eps
        # -log(num / den) == log(den) - log(num): two EUP logs, no VALU divide.
        return jnp.log(den) - jnp.log(num)

    def fold(x):
        # (r, 128) -> (8, 128) with r % 8 == 0: pure VPU adds, no cross-lane op.
        r = x.shape[0]
        return x.reshape(r // _SUBLANE, _SUBLANE, _LANE).sum(axis=0)

    n_full_sub = tile_rows // _SUB_ROWS
    rem_rows = tile_rows % _SUB_ROWS          # multiple of 8 by construction

    def accum(masked):
        def one(row0, nrows):
            x = chunk_losses(row0, nrows)
            if masked:
                # Only the partial last tile: rows >= valid_rows_last are
                # garbage from the partial block DMA -> zero them.  Tile-local
                # row indices, so int32 is always safe.
                row = row0 + lax.broadcasted_iota(jnp.int32, (nrows, _LANE), 0)
                x = jnp.where(row < valid_rows_last, x, 0.0)
            return fold(x)

        acc = jnp.zeros((_SUBLANE, _LANE), jnp.float32)
        if n_full_sub > 0:
            def body(s, a):
                row0 = pl.multiple_of(s * _SUB_ROWS, _SUB_ROWS)
                return a + one(row0, _SUB_ROWS)
            acc = lax.fori_loop(0, n_full_sub, body, acc, unroll=True)
        if rem_rows:
            acc = acc + one(n_full_sub * _SUB_ROWS, rem_rows)
        return acc

    if valid_rows_last == tile_rows:
        # Every tile is completely valid: mask-free fast path everywhere.
        out_ref[...] += accum(masked=False)
    else:
        @pl.when(i < num_tiles - 1)
        def _full_tiles():
            out_ref[...] += accum(masked=False)

        @pl.when(i == num_tiles - 1)
        def _partial_last_tile():
            out_ref[...] += accum(masked=True)


def log_prob_loss(dist_pos, dist_neg, mu, eps=1e-9, reduction="sum"):
    assert dist_pos.shape == dist_neg.shape
    n = dist_pos.size
    mu = float(mu)
    eps = float(eps)

    pos = dist_pos.reshape(-1)   # bitcast, no copy
    neg = dist_neg.reshape(-1)
    dtype = pos.dtype

    rows_raw = pl.cdiv(n, _LANE)
    single_tile = rows_raw <= _TILE_ROWS

    # Alignment: lane (128) alignment is mandatory to form the (rows,128)
    # view; for the single-tile (small) case we also round rows up to a
    # multiple of 8 so the kernel needs no masking at all.  When n is already
    # aligned (the common ML case) pad == 0 and the reshapes below are pure
    # bitcasts — zero extra HBM traffic.  Padded elements use zero-loss
    # sentinels (num == den) so they never need lane masking.
    align = _SUBLANE * _LANE if single_tile else _LANE
    pad = (-n) % align
    if pad:
        pos = jnp.pad(pos, (0, pad), constant_values=-(mu + eps))
        neg = jnp.pad(neg, (0, pad), constant_values=0.0)
    rows = (n + pad) // _LANE

    pos2d = pos.reshape(rows, _LANE)
    neg2d = neg.reshape(rows, _LANE)

    tile_rows = rows if single_tile else _TILE_ROWS
    num_tiles = pl.cdiv(rows, tile_rows)
    valid_rows_last = rows - (num_tiles - 1) * tile_rows

    kernel = functools.partial(
        _log_prob_kernel, mu=mu, eps=eps, tile_rows=tile_rows,
        valid_rows_last=valid_rows_last, num_tiles=num_tiles)

    itemsize = jnp.dtype(dtype).itemsize
    cost = pl.CostEstimate(
        flops=6 * n,
        transcendentals=2 * n,
        bytes_accessed=2 * n * itemsize + _SUBLANE * _LANE * 4)

    partial = pl.pallas_call(
        kernel,
        out_shape=jax.ShapeDtypeStruct((_SUBLANE, _LANE), jnp.float32),
        grid_spec=pltpu.PrefetchScalarGridSpec(
            num_scalar_prefetch=0,
            grid=(num_tiles,),
            in_specs=[
                pl.BlockSpec((tile_rows, _LANE), lambda i: (i, 0)),
                pl.BlockSpec((tile_rows, _LANE), lambda i: (i, 0)),
            ],
            out_specs=pl.BlockSpec((_SUBLANE, _LANE), lambda i: (0, 0)),
        ),
        compiler_params=pltpu.CompilerParams(
            dimension_semantics=("arbitrary",),
            vmem_limit_bytes=32 * 1024 * 1024,
        ),
        cost_estimate=cost,
    )(pos2d, neg2d)

    total = jnp.sum(partial)     # single cross-lane reduce, in the wrapper
    if reduction == "sum":
        return total
    return total / jnp.float32(n)


if __name__ == "__main__":
    key = jax.random.PRNGKey(0)
    k1, k2, k3, k4, k5, k6 = jax.random.split(key, 6)
    mu = 0.5
    eps = 1e-9

    def ref_loss(dp, dn, reduction):
        num = dn + mu
        den = dn + dp + 2.0 * mu
        losses = -jnp.log(num / (den + eps))
        return losses.sum() if reduction == "sum" else losses.mean()

    # Case 1: small 4-D batch (2, 4, 16, 16) = 2048 elems, aligned (zero-copy).
    shape = (2, 4, 16, 16)
    dp1 = jax.random.uniform(k1, shape, jnp.float32, 0.0, 2.0)
    dn1 = jax.random.uniform(k2, shape, jnp.float32, 0.0, 2.0)
    out_sum = jax.block_until_ready(log_prob_loss(dp1, dn1, mu, eps, "sum"))
    out_mean = jax.block_until_ready(log_prob_loss(dp1, dn1, mu, eps, "mean"))
    assert jnp.allclose(out_sum, ref_loss(dp1, dn1, "sum"), rtol=1e-5, atol=1e-3)
    assert jnp.allclose(out_mean, ref_loss(dp1, dn1, "mean"), rtol=1e-5, atol=1e-5)

    # Case 2: unaligned small vector (exercises sentinel padding path).
    n2 = 1000
    dp2 = jax.random.uniform(k3, (n2,), jnp.float32, 0.0, 2.0)
    dn2 = jax.random.uniform(k4, (n2,), jnp.float32, 0.0, 2.0)
    out2 = jax.block_until_ready(log_prob_loss(dp2, dn2, mu, eps, "sum"))
    assert jnp.allclose(out2, ref_loss(dp2, dn2, "sum"), rtol=1e-5, atol=1e-3)

    # Case 3: multi-tile streaming with a partial, row-masked last tile.
    n3 = 2 * _TILE_ROWS * _LANE + 37 * _LANE + 61
    dp3 = jax.random.uniform(k5, (n3,), jnp.float32, 0.0, 2.0)
    dn3 = jax.random.uniform(k6, (n3,), jnp.float32, 0.0, 2.0)
    out3 = jax.block_until_ready(log_prob_loss(dp3, dn3, mu, eps, "sum"))
    assert jnp.allclose(out3, ref_loss(dp3, dn3, "sum"), rtol=1e-4, atol=1e-2)

    print("KERNEL_OK")
</pallas_src>

<mosaic_0001>
module attributes {stable_mosaic.version = 11 : i64} {
  func.func @_log_prob_kernel(%arg0: i32, %arg1: memref<16x128xf32, #tpu.memory_space<vmem>>, %arg2: memref<16x128xf32, #tpu.memory_space<vmem>>, %arg3: memref<8x128xf32, #tpu.memory_space<vmem>>) attributes {dimension_semantics = [#tpu.dimension_semantics<arbitrary>], iteration_bounds = array<i64: 1>, scalar_prefetch = 0 : i64, scratch_operands = 0 : i64, tpu.core_type = #tpu.core_type<tc>, window_params = [{transform_indices = @transform_0, window_bounds = array<i64: 16, 128>}, {transform_indices = @transform_1, window_bounds = array<i64: 16, 128>}, {pipeline_mode = #tpu.pipeline_mode<synchronous>, transform_indices = @transform_2, window_bounds = array<i64: 8, 128>}]} {
    %c0_i32 = arith.constant 0 : i32
    %0 = arith.cmpi eq, %arg0, %c0_i32 : i32
    %1 = arith.extui %0 : i1 to i32
    %c0_i32_0 = arith.constant 0 : i32
    %2 = arith.cmpi ne, %1, %c0_i32_0 : i32
    scf.if %2 {
      %cst_11 = arith.constant 0.000000e+00 : f32
      %20 = vector.broadcast %cst_11 : f32 to vector<8x128xf32>
      %c0_12 = arith.constant 0 : index
      %c0_13 = arith.constant 0 : index
      %21 = vector.load %arg3[%c0_12, %c0_13] : memref<8x128xf32, #tpu.memory_space<vmem>>, vector<8x128xf32>
      tpu.vector_store %arg3[%c0_12, %c0_13], %20 {strides = array<i32>} : memref<8x128xf32, #tpu.memory_space<vmem>>, vector<8x128xf32>,
    } else {
    }
    %c0 = arith.constant 0 : index
    %c0_1 = arith.constant 0 : index
    %3 = vector.load %arg3[%c0, %c0_1] : memref<8x128xf32, #tpu.memory_space<vmem>>, vector<8x128xf32>
    %cst = arith.constant 0.000000e+00 : f32
    %4 = vector.broadcast %cst : f32 to vector<8x128xf32>
    %c0_2 = arith.constant 0 : index
    %c0_3 = arith.constant 0 : index
    %5 = vector.load %arg1[%c0_2, %c0_3] : memref<16x128xf32, #tpu.memory_space<vmem>>, vector<16x128xf32>
    %c0_4 = arith.constant 0 : index
    %c0_5 = arith.constant 0 : index
    %6 = vector.load %arg2[%c0_4, %c0_5] : memref<16x128xf32, #tpu.memory_space<vmem>>, vector<16x128xf32>
    %cst_6 = arith.constant 5.000000e-01 : f32
    %7 = vector.broadcast %cst_6 : f32 to vector<16x128xf32>
    %8 = arith.addf %6, %7 : vector<16x128xf32>
    %9 = arith.addf %6, %5 : vector<16x128xf32>
    %cst_7 = arith.constant 1.000000e+00 : f32
    %10 = vector.broadcast %cst_7 : f32 to vector<16x128xf32>
    %11 = arith.addf %9, %10 : vector<16x128xf32>
    %12 = math.log %11 : vector<16x128xf32>
    %13 = math.log %8 : vector<16x128xf32>
    %14 = arith.subf %12, %13 : vector<16x128xf32>
    %15 = vector.shape_cast %14 : vector<16x128xf32> to vector<2x8x128xf32>
    %cst_8 = arith.constant dense<0.000000e+00> : vector<8x128xf32>
    %16 = vector.multi_reduction <add>, %15, %cst_8 [0] : vector<2x8x128xf32> to vector<8x128xf32>
    %17 = arith.addf %4, %16 : vector<8x128xf32>
    %18 = arith.addf %3, %17 : vector<8x128xf32>
    %c0_9 = arith.constant 0 : index
    %c0_10 = arith.constant 0 : index
    %19 = vector.load %arg3[%c0_9, %c0_10] : memref<8x128xf32, #tpu.memory_space<vmem>>, vector<8x128xf32>
    tpu.vector_store %arg3[%c0_9, %c0_10], %18 {strides = array<i32>} : memref<8x128xf32, #tpu.memory_space<vmem>>, vector<8x128xf32>,
    return
  }
  func.func @transform_0(%arg0: i32) -> (i32, i32) {
    %c0_i32 = arith.constant 0 : i32
    %c0_i32_0 = arith.constant 0 : i32
    return %arg0, %c0_i32 : i32, i32
  }
  func.func @transform_1(%arg0: i32) -> (i32, i32) {
    %c0_i32 = arith.constant 0 : i32
    %c0_i32_0 = arith.constant 0 : i32
    return %arg0, %c0_i32 : i32, i32
  }
  func.func @transform_2(%arg0: i32) -> (i32, i32) {
    %c0_i32 = arith.constant 0 : i32
    %c0_i32_0 = arith.constant 0 : i32
    %c0_i32_1 = arith.constant 0 : i32
    return %c0_i32, %c0_i32_0 : i32, i32
  }
}

</mosaic_0001>

<llo_original>
// kernel: tpu_custom_call.1
$region0: #{tpu_custom_call.1}
  #allocation0 [shape = 'u32[]', space=smem, size = 0x4, offset = 0x4, fixed_abs, tag = 'smem constant byte address 0x4 - core index']
  #allocation1 [shape = 'u32[144,128]{1,0:T(1,128)}', space=vmem, size = 0x12000, scoped, tag = 'internal scratch']
  %s0 = inlined_call_operand.hbm [shape: f32[16,128], index: 0, kind: input, shape index: {}]
  %s1 = inlined_call_operand.hbm [shape: f32[16,128], index: 1, kind: input, shape index: {}]
  %s2 = inlined_call_operand.hbm [shape: f32[8,128], index: 2, kind: output, shape index: {}]
  %s3 = sld [smem:[#allocation0]]
  $region30: #{tpu_custom_call.1} parent=0
    _
  %s5 = ssub.s32 1, %s3
  %s6 = scalar_select 0, %s5, %s3
  $region1: #{tpu_custom_call.1} parent=0
    #allocation2 [shape = 'u8[8192]{0}', space=vmem, size = 0x2000, scoped, tag = 'input window, operand 0, single buffered']
    #allocation3 [shape = 's32[1]{0}', space=sflag, size = 0x4, scoped, tag = 'scoped memory for tpu_custom_call.1']
    #allocation4 [shape = 's32[1]{0}', space=sflag, size = 0x4, scoped, tag = 'scoped memory for tpu_custom_call.1']
    #allocation5 [shape = 'u8[8192]{0}', space=vmem, size = 0x2000, scoped, tag = 'input window, operand 1, single buffered']
    #allocation6 [shape = 's32[1]{0}', space=sflag, size = 0x4, scoped, tag = 'scoped memory for tpu_custom_call.1']
    #allocation7 [shape = 'u8[4096]{0}', space=vmem, size = 0x1000, scoped, tag = 'output window, operand 0, single buffered']
    %7 = vsyncpa [#allocation3], 0
    %8 = vsyncpa [#allocation6], 0
    %9 = vsyncpa [#allocation4], 0
    // Predicated region
    $region2: #{tpu_custom_call.1} parent=1 // pred_check
      _
    $region3: #{tpu_custom_call.1} parent=1 // pred_check_branch
      %11 = sbr.rel (0) target = $region5
    $region4: #{tpu_custom_call.1} parent=1 // pred_region
      %s13 = ssub.s32 256, 256
      %14 = vsyncadd [#allocation3], %s13
      %s15 = sshll.u32 [#allocation2], 4
      %s16 = int_to_ptr.vmem [resolvable:$true] %s15
      %21 = dma.hbm_to_vmem [thread:$0]  %s0, 256, %s16, [#allocation3], 128, 128, 8
    $region5: #{tpu_custom_call.1} parent=1 // pred_fallthru
      _
    // Predicated region
    $region6: #{tpu_custom_call.1} parent=1 // pred_check
      _
    $region7: #{tpu_custom_call.1} parent=1 // pred_check_branch
      %23 = sbr.rel (0) target = $region9
    $region8: #{tpu_custom_call.1} parent=1 // pred_region
      %s25 = ssub.s32 256, 256
      %26 = vsyncadd [#allocation6], %s25
      %s27 = sshll.u32 [#allocation5], 4
      %s28 = int_to_ptr.vmem [resolvable:$true] %s27
      %33 = dma.hbm_to_vmem [thread:$0]  %s1, 256, %s28, [#allocation6], 128, 128, 8
    $region9: #{tpu_custom_call.1} parent=1 // pred_fallthru
      _
    // Predicated region
    $region10: #{tpu_custom_call.1} parent=1 // pred_check
      _
    $region11: #{tpu_custom_call.1} parent=1 // pred_check_branch
      %35 = sbr.rel (0) target = $region13
    $region12: #{tpu_custom_call.1} parent=1 // pred_region
      %36 = dma.done [#allocation3], 256
    $region13: #{tpu_custom_call.1} parent=1 // pred_fallthru
      _
    // Predicated region
    $region14: #{tpu_custom_call.1} parent=1 // pred_check
      _
    $region15: #{tpu_custom_call.1} parent=1 // pred_check_branch
      %38 = sbr.rel (0) target = $region17
    $region16: #{tpu_custom_call.1} parent=1 // pred_region
      %39 = dma.done [#allocation6], 256
    $region17: #{tpu_custom_call.1} parent=1 // pred_fallthru
      _
    %p40 = scmp.eq.s32.totalorder 0, 0
    // Predicated region
    $region18: #{tpu_custom_call.1} parent=1 // pred_check
      %p41 = pneg %p40
    $region19: #{tpu_custom_call.1} parent=1 // pred_check_branch
      %43 = sbr.rel (%p41) target = $region21
    $region20: #{tpu_custom_call.1} parent=1 // pred_region
      %44 = vst [vmem:[#allocation7] sm:$0xff] 0.0
    $region21: #{tpu_custom_call.1} parent=1 // pred_fallthru
      _
    %v45 = vld [vmem:[#allocation7] sm:$0xff]
    %v46 = vld [vmem:[#allocation2] sm:$0xff]
    %v47 = vld [vmem:[#allocation2 + $0x8] sm:$0xff]
    %v48 = vld [vmem:[#allocation5] sm:$0xff]
    %v49 = vld [vmem:[#allocation5 + $0x8] sm:$0xff]
    %v50 = vadd.f32 %v48, 0.5
    %v51 = vadd.f32 %v49, 0.5
    %v52 = vadd.f32 %v48, %v46
    %v53 = vadd.f32 %v49, %v47
    %v54 = vadd.f32 %v52, 1.0
    %v55 = vadd.f32 %v53, 1.0
    %v56 = vlog2.pop %v54
    %v57 = vmul.f32 %v56, 0.6931472
    %v58 = vlog2.pop %v55
    %v59 = vmul.f32 %v58, 0.6931472
    %v60 = vlog2.pop %v50
    %v61 = vmul.f32 %v60, 0.6931472
    %v62 = vlog2.pop %v51
    %v63 = vmul.f32 %v62, 0.6931472
    %v64 = vsub.f32 %v57, %v61
    %v65 = vsub.f32 %v59, %v63
    %v66 = vadd.f32 %v64, %v65
    %v67 = vadd.f32 %v66, 0.0
    %v68 = vadd.f32 %v45, %v67
    %69 = vst [vmem:[#allocation7] sm:$0xff] %v68
    // Predicated region
    $region22: #{tpu_custom_call.1} parent=1 // pred_check
      _
    $region23: #{tpu_custom_call.1} parent=1 // pred_check_branch
      %71 = sbr.rel (0) target = $region25
    $region24: #{tpu_custom_call.1} parent=1 // pred_region
      %s73 = ssub.s32 128, 128
      %74 = vsyncadd [#allocation4], %s73
      %s76 = sshll.u32 [#allocation7], 4
      %s77 = int_to_ptr.vmem [resolvable:$true] %s76
      %79 = dma.vmem_to_hbm [thread:$0]  %s77, 128, %s2, [#allocation4]
    $region25: #{tpu_custom_call.1} parent=1 // pred_fallthru
      _
    // Predicated region
    $region26: #{tpu_custom_call.1} parent=1 // pred_check
      _
    $region27: #{tpu_custom_call.1} parent=1 // pred_check_branch
      %81 = sbr.rel (0) target = $region29
    $region28: #{tpu_custom_call.1} parent=1 // pred_region
      %82 = dma.done [#allocation4], 128
    $region29: #{tpu_custom_call.1} parent=1 // pred_fallthru
      _
    %83 = vsyncpa [#allocation3], 1
    %84 = vsyncpa [#allocation6], 1
    %85 = vsyncpa [#allocation4], 1

</llo_original>
